<compile_context>
chip_gen: v7x
topology: tpu7x:2x2x1
jax: 0.10.0
libtpu: 0.0.40
codegen_flags: <defaults>
</compile_context>

<pallas_src>
import jax
import jax.numpy as jnp
from jax.experimental import pallas as pl
from jax.experimental.pallas import tpu as pltpu


def _copy_kernel(x_ref, o_ref):
    # Identity (eval-mode) dropout: output is a copy of the input tile.
    o_ref[...] = x_ref[...]


_LANE_DENSE_COLS = 512          # >= 512-wide last dim -> unmasked full vst
_SUBLANE = 8
_MAX_TILE_BYTES = 4 << 20       # ~4 MiB per-operand tile (v7x-safe w/ dbl buf)


def _pallas_copy(x):
    """Copy `x` through a Pallas kernel with the cheapest legal layout."""
    n = x.size
    itemsize = x.dtype.itemsize

    if n % (_SUBLANE * _LANE_DENSE_COLS) == 0 and n > 0:
        # Lane-dense gridded path for realistic sizes.
        cols = _LANE_DENSE_COLS
        rows = n // cols                       # multiple of 8 by construction
        x2d = x.reshape(rows, cols)

        max_tile_rows = max(_SUBLANE,
                            (_MAX_TILE_BYTES // (cols * itemsize))
                            // _SUBLANE * _SUBLANE)
        tile_rows = min(rows, max_tile_rows)
        while rows % tile_rows != 0:           # terminates at 8 (rows % 8 == 0)
            tile_rows -= _SUBLANE

        grid = (rows // tile_rows,)
        out = pl.pallas_call(
            _copy_kernel,
            grid=grid,
            in_specs=[pl.BlockSpec((tile_rows, cols), lambda i: (i, 0))],
            out_specs=pl.BlockSpec((tile_rows, cols), lambda i: (i, 0)),
            out_shape=jax.ShapeDtypeStruct((rows, cols), x.dtype),
            compiler_params=pltpu.CompilerParams(
                dimension_semantics=("parallel",)),   # both TCs on v7x
        )(x2d)
        return out.reshape(x.shape)

    # Tiny / awkward shapes: one full-extent block, no grid (exempt from the
    # (8,128) tiling rule); launch overhead dominates, nothing to tile.
    full_spec = pl.BlockSpec(x.shape, lambda: (0,) * x.ndim)
    return pl.pallas_call(
        _copy_kernel,
        in_specs=[full_spec],
        out_specs=full_spec,
        out_shape=jax.ShapeDtypeStruct(x.shape, x.dtype),
    )(x)


def model_forward(x1, x2):
    """Pallas equivalent of Model.forward: returns (x3, x4).

    x2 plays the role of the (ill-typed) `p` argument of F.drop; under
    identity-dropout semantics it never influences the result, so it is not
    passed to any kernel.  x3 is x1 itself (zero-cost identity); x4 is a
    single Pallas copy of x1 so a distinct buffer exists for the second
    output.
    """
    del x2  # semantically unused (identity dropout)
    x3 = x1
    x4 = _pallas_copy(x1)
    return x3, x4


if __name__ == "__main__":
    key = jax.random.PRNGKey(0)
    k1, k2 = jax.random.split(key)
    # Shapes from the reference script: x1, x2 = randn(1, 2, 2)
    x1 = jax.random.normal(k1, (1, 2, 2), dtype=jnp.float32)
    x2 = jax.random.normal(k2, (1, 2, 2), dtype=jnp.float32)

    x3, x4 = model_forward(x1, x2)
    jax.block_until_ready((x3, x4))

    # Identity-dropout semantics: both outputs equal x1.
    assert x3.shape == (1, 2, 2) and x4.shape == (1, 2, 2)
    assert jnp.allclose(x3, x1) and jnp.allclose(x4, x1)

    # Sanity-check the lane-dense gridded path as well (non-toy shape).
    big = jax.random.normal(k2, (16, 8, 512), dtype=jnp.float32)
    big_copy = _pallas_copy(big)
    jax.block_until_ready(big_copy)
    assert jnp.array_equal(big_copy, big)

    print("KERNEL_OK")
</pallas_src>

<mosaic_0001>
module attributes {stable_mosaic.version = 11 : i64} {
  func.func @_copy_kernel(%arg0: memref<1x2x2xf32, #tpu.memory_space<vmem>>, %arg1: memref<1x2x2xf32, #tpu.memory_space<vmem>>) attributes {dimension_semantics = [], scalar_prefetch = 0 : i64, scratch_operands = 0 : i64, tpu.core_type = #tpu.core_type<tc>} {
    %c0 = arith.constant 0 : index
    %c0_0 = arith.constant 0 : index
    %c0_1 = arith.constant 0 : index
    %0 = vector.load %arg0[%c0, %c0_0, %c0_1] : memref<1x2x2xf32, #tpu.memory_space<vmem>>, vector<1x2x2xf32>
    %c0_2 = arith.constant 0 : index
    %c0_3 = arith.constant 0 : index
    %c0_4 = arith.constant 0 : index
    %1 = vector.load %arg1[%c0_2, %c0_3, %c0_4] : memref<1x2x2xf32, #tpu.memory_space<vmem>>, vector<1x2x2xf32>
    tpu.vector_store %arg1[%c0_2, %c0_3, %c0_4], %0 {strides = array<i32>} : memref<1x2x2xf32, #tpu.memory_space<vmem>>, vector<1x2x2xf32>,
    return
  }
}

</mosaic_0001>

<llo_original>
// kernel: tpu_custom_call.1
$region0: #{tpu_custom_call.1}
  #allocation0 [shape = 'u32[]', space=smem, size = 0x4, offset = 0x4, fixed_abs, tag = 'smem constant byte address 0x4 - core index']
  #allocation1 [shape = 'u32[144,128]{1,0:T(1,128)}', space=vmem, size = 0x12000, scoped, tag = 'internal scratch']
  %s0 = inlined_call_operand.hbm [shape: f32[1,2,2], index: 0, kind: input, shape index: {}]
  %s1 = inlined_call_operand.hbm [shape: f32[1,2,2], index: 1, kind: output, shape index: {}]
  %s2 = sld [smem:[#allocation0]]
  $region18: #{tpu_custom_call.1} parent=0
    _
  %s4 = ssub.s32 1, %s2
  %s5 = scalar_select 0, %s4, %s2
  $region1: #{tpu_custom_call.1} parent=0
    #allocation2 [shape = 'u8[1024]{0}', space=vmem, size = 0x400, scoped, tag = 'input window, operand 0, single buffered']
    #allocation3 [shape = 's32[1]{0}', space=sflag, size = 0x4, scoped, tag = 'scoped memory for tpu_custom_call.1']
    #allocation4 [shape = 's32[1]{0}', space=sflag, size = 0x4, scoped, tag = 'scoped memory for tpu_custom_call.1']
    #allocation5 [shape = 'u8[1024]{0}', space=vmem, size = 0x400, scoped, tag = 'output window, operand 0, single buffered']
    %6 = vsyncpa [#allocation3], 0
    %7 = vsyncpa [#allocation4], 0
    // Predicated region
    $region2: #{tpu_custom_call.1} parent=1 // pred_check
      _
    $region3: #{tpu_custom_call.1} parent=1 // pred_check_branch
      %9 = sbr.rel (0) target = $region5
    $region4: #{tpu_custom_call.1} parent=1 // pred_region
      %s11 = ssub.s32 32, 32
      %12 = vsyncadd [#allocation3], %s11
      %s14 = sshll.u32 [#allocation2], 4
      %s15 = int_to_ptr.vmem [resolvable:$true] %s14
      %17 = dma.hbm_to_vmem [thread:$0]  %s0, 32, %s15, [#allocation3]
    $region5: #{tpu_custom_call.1} parent=1 // pred_fallthru
      _
    // Predicated region
    $region6: #{tpu_custom_call.1} parent=1 // pred_check
      _
    $region7: #{tpu_custom_call.1} parent=1 // pred_check_branch
      %19 = sbr.rel (0) target = $region9
    $region8: #{tpu_custom_call.1} parent=1 // pred_region
      %20 = dma.done [#allocation3], 32
    $region9: #{tpu_custom_call.1} parent=1 // pred_fallthru
      _
    %v21 = vld [vmem:[#allocation2] sm:$0x3]
    %vm22 = vcmask 9216
    %23 = vst.msk [vmem:[#allocation5] sm:$0x3] %vm22, %v21
    // Predicated region
    $region10: #{tpu_custom_call.1} parent=1 // pred_check
      _
    $region11: #{tpu_custom_call.1} parent=1 // pred_check_branch
      %25 = sbr.rel (0) target = $region13
    $region12: #{tpu_custom_call.1} parent=1 // pred_region
      %s27 = ssub.s32 32, 32
      %28 = vsyncadd [#allocation4], %s27
      %s30 = sshll.u32 [#allocation5], 4
      %s31 = int_to_ptr.vmem [resolvable:$true] %s30
      %33 = dma.vmem_to_hbm [thread:$0]  %s31, 32, %s1, [#allocation4]
    $region13: #{tpu_custom_call.1} parent=1 // pred_fallthru
      _
    // Predicated region
    $region14: #{tpu_custom_call.1} parent=1 // pred_check
      _
    $region15: #{tpu_custom_call.1} parent=1 // pred_check_branch
      %35 = sbr.rel (0) target = $region17
    $region16: #{tpu_custom_call.1} parent=1 // pred_region
      %36 = dma.done [#allocation4], 32
    $region17: #{tpu_custom_call.1} parent=1 // pred_fallthru
      _
    %37 = vsyncpa [#allocation3], 1
    %38 = vsyncpa [#allocation4], 1

</llo_original>
